<compile_context>
chip_gen: v6e
topology: v6e:2x2x1
jax: 0.10.0
libtpu: 0.0.40
codegen_flags: <defaults>
</compile_context>

<pallas_src>
from functools import partial

import numpy as np

import jax
import jax.numpy as jnp
from jax.experimental import pallas as pl
from jax.experimental.pallas import tpu as pltpu

N_FIELDS = 8        # number of task heads (len(lambdas))
BUF_LEN = 53        # logical ring-buffer length (torch: (len(lambdas), 53))
BUF_PAD = 128       # lane-padded physical length -> dense (8, 128) tiles
STATS_LANES = 128   # lane-dense stats output slab


def _autotune_kernel(idx_ref, buf_ref, params_ref, newbuf_ref, stats_ref):
    """stats_ref[:, 0] = normalized epsilons, stats_ref[0, 1] = total loss."""
    idx = idx_ref[0]                                  # scalar from SMEM
    buf = buf_ref[...]                                # (N, BUF_PAD) f32
    n, kp = buf.shape
    losses = params_ref[:, 0:1]                       # (N, 1) f32
    lambdas = params_ref[:, 1:2]                      # (N, 1) f32

    col_ids = jax.lax.broadcasted_iota(jnp.int32, (n, kp), 1)
    valid = col_ids < BUF_LEN                         # static mask of real columns

    # --- ring-buffer column update: buffer[:, idx] = losses ----------------
    # Full-tile store is required: the aliased output VMEM buffer is not
    # guaranteed to hold the input contents, so we always write all columns.
    new_buf = jnp.where(col_ids == idx, losses, buf)
    newbuf_ref[...] = new_buf                         # one dense (8,128) store

    # --- epsilons: population std over the 53 valid ring-buffer columns ----
    # Centered two-pass form (avoids f32 cancellation vs. torch's f64
    # one-pass formula).  NaNs in unfilled valid columns propagate -> 10.0.
    inv_k = jnp.float32(1.0 / BUF_LEN)
    buf_v = jnp.where(valid, new_buf, jnp.float32(0.0))
    mean = jnp.sum(buf_v, axis=1, keepdims=True) * inv_k            # (N, 1)
    centered = jnp.where(valid, new_buf - mean, jnp.float32(0.0))
    var = jnp.sum(centered * centered, axis=1, keepdims=True) * inv_k
    eps = jnp.sqrt(var)

    # epsilons[isnan] = 10.0 ; clamp(0.01, 100.0)
    eps = jnp.where(jnp.isnan(eps), jnp.float32(10.0), eps)
    eps = jnp.clip(eps, 0.01, 100.0)

    # --- normalization + total loss, single (exact) reciprocal reused ------
    inv_eps = pl.reciprocal(eps)                      # (N, 1)
    scale = jnp.sum(inv_eps) * jnp.float32(1.0 / n)   # sum(1/eps) / N
    eps_scaled = eps * scale
    # total = sum(lambda_i * loss_i / (eps_i * scale))
    total = jnp.sum(lambdas * losses * inv_eps) / scale

    # --- pack stats into one lane-dense slab, single unmasked store --------
    scol = jax.lax.broadcasted_iota(jnp.int32, (n, STATS_LANES), 1)
    srow = jax.lax.broadcasted_iota(jnp.int32, (n, STATS_LANES), 0)
    packed = jnp.where(
        scol == 0, eps_scaled,
        jnp.where((scol == 1) & (srow == 0), total, jnp.float32(0.0)))
    stats_ref[...] = packed                           # one dense (8,128) store


@partial(jax.jit, donate_argnums=(0,))
def multihead_autotune_variance_forward(buffer, buffer_index, flat_head_losses,
                                        lambdas):
    """Functional forward (jitted; no host syncs; buffer updated in place).

    Args:
      buffer:            (N_FIELDS, BUF_PAD) float32.  Columns 0..BUF_LEN-1
                         hold the ring buffer (NaN for unfilled slots);
                         columns BUF_LEN.. are padding.  Donated (in place).
      buffer_index:      int32 0-d device scalar, previous ring index.
      flat_head_losses:  (N_FIELDS,) float32 current per-head losses.
      lambdas:           (N_FIELDS,) float32.

    Returns: (total_loss 0-d, flat_head_losses, new_buffer, new_index 0-d i32,
              epsilons (N_FIELDS,))   -- all device arrays.
    """
    n, kp = buffer.shape
    assert buffer.dtype == jnp.float32, buffer.dtype
    new_index = ((buffer_index + 1) % BUF_LEN).astype(jnp.int32).reshape((1,))
    # One merged (N, 2) VMEM input: col 0 = loss, col 1 = lambda.
    params = jnp.stack(
        [flat_head_losses.astype(jnp.float32), lambdas.astype(jnp.float32)],
        axis=1)

    new_buf, stats = pl.pallas_call(
        _autotune_kernel,
        out_shape=(
            jax.ShapeDtypeStruct((n, kp), jnp.float32),           # buffer
            jax.ShapeDtypeStruct((n, STATS_LANES), jnp.float32),  # stats slab
        ),
        in_specs=[
            pl.BlockSpec(memory_space=pltpu.MemorySpace.SMEM),   # buffer_index
            pl.BlockSpec(memory_space=pltpu.MemorySpace.VMEM),   # buffer
            pl.BlockSpec(memory_space=pltpu.MemorySpace.VMEM),   # params
        ],
        out_specs=(
            pl.BlockSpec(memory_space=pltpu.MemorySpace.VMEM),
            pl.BlockSpec(memory_space=pltpu.MemorySpace.VMEM),
        ),
        # In-place ring-buffer update: input 1 (buffer) aliases output 0.
        input_output_aliases={1: 0},
    )(new_index, buffer, params)

    eps = stats[:, 0]
    total = stats[0, 1]
    # Device arrays only -- no int()/float() host round-trips inside the step.
    return total, flat_head_losses, new_buf, new_index[0], eps


def _reference(buffer_valid, buffer_index, flat_head_losses, lambdas):
    """Pure numpy reference mirroring the PyTorch forward (float64, 53 cols)."""
    buf = np.array(buffer_valid, dtype=np.float64)
    n, k = buf.shape
    idx = (buffer_index + 1) % k
    buf[:, idx] = np.asarray(flat_head_losses, dtype=np.float64)
    eps = np.sqrt(np.mean(buf ** 2, axis=1) - np.sum(buf, axis=1) ** 2 / k ** 2)
    eps[np.isnan(eps)] = 10.0
    eps = np.clip(eps, 0.01, 100.0)
    eps = eps * np.sum(1.0 / eps) / n
    total = np.sum(np.asarray(lambdas, dtype=np.float64)
                   * np.asarray(flat_head_losses, dtype=np.float64) / eps)
    return total, buf, eps


if __name__ == "__main__":
    key = jax.random.PRNGKey(0)
    k_buf, k_loss = jax.random.split(key)

    # Deterministic "state": rows 0..3 simulate heads with >BUF_LEN past steps
    # (fully populated -> finite-variance path); rows 4..7 are still NaN
    # (exercises the isnan -> 10.0 path, as right after __init__).
    filled = jax.random.uniform(k_buf, (N_FIELDS // 2, BUF_LEN), jnp.float32,
                                minval=0.1, maxval=2.0)
    nan_rows = jnp.full((N_FIELDS - N_FIELDS // 2, BUF_LEN), jnp.nan,
                        jnp.float32)
    buffer_valid = jnp.concatenate([filled, nan_rows], axis=0)      # (8, 53)
    pad = jnp.zeros((N_FIELDS, BUF_PAD - BUF_LEN), jnp.float32)
    buffer = jnp.concatenate([buffer_valid, pad], axis=1)           # (8, 128)

    # Previous ring index as a device int32 scalar (same aval every step).
    buffer_index = jnp.array(4, dtype=jnp.int32)   # kernel writes column 5

    # Current per-head scalar losses (stand-ins for the inner loss modules).
    flat_head_losses = jax.random.uniform(k_loss, (N_FIELDS,), jnp.float32,
                                          minval=0.05, maxval=3.0)
    lambdas = jnp.ones((N_FIELDS,), jnp.float32)   # default lambdas = 1.0

    # Snapshot host copies BEFORE the call: `buffer` is donated (in-place).
    buffer_valid_np = np.array(buffer_valid)
    losses_np = np.array(flat_head_losses)
    lambdas_np = np.array(lambdas)

    total, _, new_buf, new_idx, eps = multihead_autotune_variance_forward(
        buffer, buffer_index, flat_head_losses, lambdas)
    jax.block_until_ready((total, new_buf, new_idx, eps))

    ref_total, ref_buf, ref_eps = _reference(buffer_valid_np, int(buffer_index),
                                             losses_np, lambdas_np)

    np.testing.assert_allclose(np.array(eps), ref_eps, rtol=1e-4, atol=1e-5)
    np.testing.assert_allclose(float(total), ref_total, rtol=1e-4, atol=1e-5)
    # Ring-buffer writeback: updated column + preserved rest (NaN-safe),
    # padded lanes stay zero.
    np.testing.assert_allclose(np.array(new_buf)[:, :BUF_LEN], ref_buf,
                               rtol=1e-6, equal_nan=True)
    np.testing.assert_allclose(np.array(new_buf)[:, BUF_LEN:], 0.0)
    assert int(new_idx) == (int(buffer_index) + 1) % BUF_LEN

    print("KERNEL_OK")
</pallas_src>

<mosaic_0001>
module attributes {stable_mosaic.version = 11 : i64} {
  func.func @_autotune_kernel(%arg0: memref<1xi32, #tpu.memory_space<smem>>, %arg1: memref<8x128xf32, #tpu.memory_space<vmem>>, %arg2: memref<8x2xf32, #tpu.memory_space<vmem>>, %arg3: memref<8x128xf32, #tpu.memory_space<vmem>>, %arg4: memref<8x128xf32, #tpu.memory_space<vmem>>) attributes {dimension_semantics = [], scalar_prefetch = 0 : i64, scratch_operands = 0 : i64, tpu.core_type = #tpu.core_type<tc>} {
    %c0 = arith.constant 0 : index
    %0 = memref.load %arg0[%c0] : memref<1xi32, #tpu.memory_space<smem>>
    %c0_0 = arith.constant 0 : index
    %c0_1 = arith.constant 0 : index
    %1 = vector.load %arg1[%c0_0, %c0_1] : memref<8x128xf32, #tpu.memory_space<vmem>>, vector<8x128xf32>
    %c0_2 = arith.constant 0 : index
    %c0_3 = arith.constant 0 : index
    %2 = vector.load %arg2[%c0_2, %c0_3] : memref<8x2xf32, #tpu.memory_space<vmem>>, vector<8x1xf32>
    %c0_4 = arith.constant 0 : index
    %c1 = arith.constant 1 : index
    %3 = vector.load %arg2[%c0_4, %c1] : memref<8x2xf32, #tpu.memory_space<vmem>>, vector<8x1xf32>
    %4 = tpu.iota {dimensions = array<i32: 1>} : vector<8x128xi32>
    %c53_i32 = arith.constant 53 : i32
    %5 = vector.broadcast %c53_i32 : i32 to vector<8x128xi32>
    %6 = arith.cmpi slt, %4, %5 : vector<8x128xi32>
    %7 = vector.broadcast %0 : i32 to vector<8x128xi32>
    %8 = arith.cmpi eq, %4, %7 : vector<8x128xi32>
    %9 = vector.shape_cast %2 : vector<8x1xf32> to vector<8x1xf32>
    %10 = vector.broadcast %9 : vector<8x1xf32> to vector<8x128xf32>
    %11 = arith.select %8, %10, %1 : vector<8x128xi1>, vector<8x128xf32>
    %c0_5 = arith.constant 0 : index
    %c0_6 = arith.constant 0 : index
    %12 = vector.load %arg3[%c0_5, %c0_6] : memref<8x128xf32, #tpu.memory_space<vmem>>, vector<8x128xf32>
    tpu.vector_store %arg3[%c0_5, %c0_6], %11 {strides = array<i32>} : memref<8x128xf32, #tpu.memory_space<vmem>>, vector<8x128xf32>,
    %cst = arith.constant 0.000000e+00 : f32
    %13 = vector.broadcast %cst : f32 to vector<8x128xf32>
    %14 = arith.select %6, %11, %13 : vector<8x128xi1>, vector<8x128xf32>
    %cst_7 = arith.constant dense<0.000000e+00> : vector<8xf32>
    %15 = vector.multi_reduction <add>, %14, %cst_7 [1] : vector<8x128xf32> to vector<8xf32>
    %16 = vector.shape_cast %15 : vector<8xf32> to vector<8x1xf32>
    %cst_8 = arith.constant 0.0188679248 : f32
    %17 = vector.broadcast %cst_8 : f32 to vector<8x1xf32>
    %18 = arith.mulf %16, %17 : vector<8x1xf32>
    %19 = vector.broadcast %18 : vector<8x1xf32> to vector<8x128xf32>
    %20 = arith.subf %11, %19 : vector<8x128xf32>
    %cst_9 = arith.constant 0.000000e+00 : f32
    %21 = vector.broadcast %cst_9 : f32 to vector<8x128xf32>
    %22 = arith.select %6, %20, %21 : vector<8x128xi1>, vector<8x128xf32>
    %23 = arith.mulf %22, %22 : vector<8x128xf32>
    %cst_10 = arith.constant dense<0.000000e+00> : vector<8xf32>
    %24 = vector.multi_reduction <add>, %23, %cst_10 [1] : vector<8x128xf32> to vector<8xf32>
    %25 = vector.shape_cast %24 : vector<8xf32> to vector<8x1xf32>
    %cst_11 = arith.constant 0.0188679248 : f32
    %26 = vector.broadcast %cst_11 : f32 to vector<8x1xf32>
    %27 = arith.mulf %25, %26 : vector<8x1xf32>
    %28 = math.sqrt %27 : vector<8x1xf32>
    %29 = arith.cmpf one, %28, %28 : vector<8x1xf32>
    %cst_12 = arith.constant 1.000000e+01 : f32
    %30 = vector.broadcast %cst_12 : f32 to vector<8x1xf32>
    %31 = arith.select %29, %30, %28 : vector<8x1xi1>, vector<8x1xf32>
    %cst_13 = arith.constant 0.00999999977 : f32
    %cst_14 = arith.constant 1.000000e+02 : f32
    %32 = vector.broadcast %cst_13 : f32 to vector<8x1xf32>
    %33 = arith.maximumf %32, %31 : vector<8x1xf32>
    %34 = vector.broadcast %cst_14 : f32 to vector<8x1xf32>
    %35 = arith.minimumf %34, %33 : vector<8x1xf32>
    %36 = tpu.reciprocal %35 : vector<8x1xf32> -> vector<8x1xf32>
    %37 = vector.shape_cast %36 : vector<8x1xf32> to vector<1x8x1xf32>
    %cst_15 = arith.constant dense<0.000000e+00> : vector<1xf32>
    %38 = vector.multi_reduction <add>, %37, %cst_15 [1, 2] : vector<1x8x1xf32> to vector<1xf32>
    %39 = vector.shape_cast %38 : vector<1xf32> to vector<1x1x1xf32>
    %40 = vector.extract %39[0, 0, 0] : f32 from vector<1x1x1xf32>
    %cst_16 = arith.constant 1.250000e-01 : f32
    %41 = arith.mulf %40, %cst_16 : f32
    %42 = vector.broadcast %41 : f32 to vector<8x1xf32>
    %43 = arith.mulf %35, %42 : vector<8x1xf32>
    %44 = arith.mulf %3, %2 : vector<8x1xf32>
    %45 = arith.mulf %44, %36 : vector<8x1xf32>
    %46 = vector.shape_cast %45 : vector<8x1xf32> to vector<1x8x1xf32>
    %cst_17 = arith.constant dense<0.000000e+00> : vector<1xf32>
    %47 = vector.multi_reduction <add>, %46, %cst_17 [1, 2] : vector<1x8x1xf32> to vector<1xf32>
    %48 = vector.shape_cast %47 : vector<1xf32> to vector<1x1x1xf32>
    %49 = vector.extract %48[0, 0, 0] : f32 from vector<1x1x1xf32>
    %50 = arith.divf %49, %41 : f32
    %51 = tpu.iota {dimensions = array<i32: 1>} : vector<8x128xi32>
    %52 = tpu.iota {dimensions = array<i32: 0>} : vector<8x128xi32>
    %c0_i32 = arith.constant 0 : i32
    %53 = vector.broadcast %c0_i32 : i32 to vector<8x128xi32>
    %54 = arith.cmpi eq, %51, %53 : vector<8x128xi32>
    %c1_i32 = arith.constant 1 : i32
    %55 = vector.broadcast %c1_i32 : i32 to vector<8x128xi32>
    %56 = arith.cmpi eq, %51, %55 : vector<8x128xi32>
    %c0_i32_18 = arith.constant 0 : i32
    %57 = vector.broadcast %c0_i32_18 : i32 to vector<8x128xi32>
    %58 = arith.cmpi eq, %52, %57 : vector<8x128xi32>
    %59 = arith.andi %56, %58 : vector<8x128xi1>
    %cst_19 = arith.constant 0.000000e+00 : f32
    %60 = vector.broadcast %50 : f32 to vector<8x128xf32>
    %61 = vector.broadcast %cst_19 : f32 to vector<8x128xf32>
    %62 = arith.select %59, %60, %61 : vector<8x128xi1>, vector<8x128xf32>
    %63 = vector.shape_cast %43 : vector<8x1xf32> to vector<8x1xf32>
    %64 = vector.broadcast %63 : vector<8x1xf32> to vector<8x128xf32>
    %65 = arith.select %54, %64, %62 : vector<8x128xi1>, vector<8x128xf32>
    %c0_20 = arith.constant 0 : index
    %c0_21 = arith.constant 0 : index
    %66 = vector.load %arg4[%c0_20, %c0_21] : memref<8x128xf32, #tpu.memory_space<vmem>>, vector<8x128xf32>
    tpu.vector_store %arg4[%c0_20, %c0_21], %65 {strides = array<i32>} : memref<8x128xf32, #tpu.memory_space<vmem>>, vector<8x128xf32>,
    return
  }
}

</mosaic_0001>

<llo_original>
// kernel: multihead_autotune_variance_forward.1
$region0: #{multihead_autotune_variance_forward.1}
  #allocation0 [shape = 'u32[]', space=smem, size = 0x4, offset = 0x4, fixed_abs, tag = 'smem constant byte address 0x4 - core index']
  #allocation1 [shape = 'u32[144,128]{1,0:T(1,128)}', space=vmem, size = 0x12000, scoped, tag = 'internal scratch']
  #allocation2 [shape = 's32[1]{0:T(128)S(6)}', space=smem, size = 0x200, scoped, tag = 'scoped memory for multihead_autotune_variance_forward.1']
  %s0 = inlined_call_operand.<no memory space> [shape: s32[1], index: 0, kind: input, shape index: {}]
  %s1 = inlined_call_operand.vmem [shape: f32[8,128], index: 1, kind: input, shape index: {}, may-alias: {1,3}]
  %s2 = inlined_call_operand.vmem [shape: f32[8,2], index: 2, kind: input, shape index: {}]
  %s3 = inlined_call_operand.vmem [shape: f32[8,128], index: 3, kind: output, shape index: {0}, may-alias: {1,3}]
  %s4 = inlined_call_operand.vmem [shape: f32[8,128], index: 4, kind: output, shape index: {1}]
  %5 = xla_tuple %s3, %s4
  %s6 = sld [smem:[#allocation0]]
  $region30: #{multihead_autotune_variance_forward.1} parent=0
    _
  %s8 = ssub.s32 1, %s6
  %s9 = scalar_select 0, %s8, %s6
  %10 = sst [smem:[#allocation2]] %s0
  // Predicated region
  $region2: #{multihead_autotune_variance_forward.1} parent=0 // pred_check
    _
  $region3: #{multihead_autotune_variance_forward.1} parent=0 // pred_check_branch
    %12 = sbr.rel (0) target = $region5
  $region4: #{multihead_autotune_variance_forward.1} parent=0 // pred_region
    _
  $region5: #{multihead_autotune_variance_forward.1} parent=0 // pred_fallthru
    _
  // Predicated region
  $region6: #{multihead_autotune_variance_forward.1} parent=0 // pred_check
    _
  $region7: #{multihead_autotune_variance_forward.1} parent=0 // pred_check_branch
    %14 = sbr.rel (0) target = $region9
  $region8: #{multihead_autotune_variance_forward.1} parent=0 // pred_region
    _
  $region9: #{multihead_autotune_variance_forward.1} parent=0 // pred_fallthru
    _
  // Predicated region
  $region10: #{multihead_autotune_variance_forward.1} parent=0 // pred_check
    _
  $region11: #{multihead_autotune_variance_forward.1} parent=0 // pred_check_branch
    %16 = sbr.rel (0) target = $region13
  $region12: #{multihead_autotune_variance_forward.1} parent=0 // pred_region
    _
  $region13: #{multihead_autotune_variance_forward.1} parent=0 // pred_fallthru
    _
  %s17 = sld [smem:[#allocation2]]
  %v18 = vld [vmem:[%s1] sm:$0xff]
  %v19 = vld [vmem:[%s2] sm:$0xff]
  %v20 = vlaneseq
  %v21 = vand.u32 %v20, 127
  %vm22 = vcmp.lt.s32.totalorder %v21, 53
  %v23 = vstv %s17
  %vm24 = vcmp.eq.s32.totalorder %v21, %v23
  %26 = vset.pattern.permute.xlu0 0
  %27 = vperm.xlu0 %26, %v19
  %v28 = vpop.permute.xlu0 %27
  %v30 = vsel %vm24, %v28, %v18
  %31 = vst [vmem:[%s3] sm:$0xff] %v30
  %v32 = vsel %vm22, %v30, 0.0
  %33 = vadd.xlane.f32.xlu0 %v32
  %v34 = vpop.xlane.xlu0 %33
  %v35 = vmul.f32 %v34, 0.018867925
  %v36 = vsub.f32 %v30, %v35
  %v37 = vsel %vm22, %v36, 0.0
  %v38 = vmul.f32 %v37, %v37
  %39 = vadd.xlane.f32.xlu0 %v38
  %v40 = vpop.xlane.xlu0 %39
  %v41 = vmul.f32 %v40, 0.018867925
  %v42 = vrsqrt.pop %v41
  %v43 = vmul.f32 %v41, %v42
  %vm44 = vcmp.eq.f32.partialorder %v41, inf
  %v45 = vsel %vm44, %v41, %v43
  %vm46 = vcmp.eq.f32.partialorder %v41, 0.0
  %v47 = vand.u32 %v41, 2147483648
  %v48 = vsel %vm46, %v47, %v45
  %vm49 = vcmp.ne.f32.partialorder %v48, %v48
  %v50 = vsel %vm49, 10.0, %v48
  %v51 = vmax.f32 %v50, 0.01
  %v52 = vmin.f32 %v51, 100.0
  %v53 = vrcp.pop %v52
  %vm54 = vcmask 7168
  %v55 = vsel %vm54, %v53, 0.0
  %56 = vadd.xlane.f32.xlu0 %v55
  %v57 = vpop.xlane.xlu0 %56
  %v58 = vrot.slane %v57, 4
  %v59 = vadd.f32 %v57, %v58
  %v60 = vrot.slane %v59, 2
  %v61 = vadd.f32 %v59, %v60
  %v62 = vrot.slane %v61, 1
  %v63 = vadd.f32 %v61, %v62
  %s64 = vtos %v63
  %s65 = smul.f32 %s64, 0.125
  %v66 = vstv %s65
  %v67 = vmul.f32 %v52, %v66
  %68 = vrot.lane.b32.xlu0 %v19, 1
  %v69 = vpop.permute.xlu0 %68
  %v71 = vmul.f32 %v19, %v69
  %v72 = vmul.f32 %v71, %v53
  %74 = vrot.lane.b32.xlu0 %v72, 127
  %v75 = vpop.permute.xlu0 %74
  %v77 = vsel %vm54, %v75, 0.0
  %78 = vadd.xlane.f32.xlu0 %v77
  %v79 = vpop.xlane.xlu0 %78
  %v80 = vrot.slane %v79, 4
  %v81 = vadd.f32 %v79, %v80
  %v82 = vrot.slane %v81, 2
  %v83 = vadd.f32 %v81, %v82
  %v84 = vrot.slane %v83, 1
  %v85 = vadd.f32 %v83, %v84
  %s86 = vtos %v85
  %v87 = vstv %s65
  %v88 = vrcp.pop %v87
  %s89 = vtos %v88
  %s90 = smul.f32 %s86, %s89
  %v91 = vlaneseq
  %v92 = vshrl.u32 %v91, 7
  %vm93 = vcmp.eq.s32.totalorder %v21, 0
  %vm94 = vcmp.eq.s32.totalorder %v21, 1
  %vm95 = vcmp.eq.s32.totalorder %v92, 0
  %vm96 = vmand %vm94, %vm95
  %v97 = vstv %s90
  %v98 = vsel %vm96, %v97, 0.0
  %v99 = vsel %vm93, %v67, %v98
  %100 = vst [vmem:[%s4] sm:$0xff] %v99
  // Predicated region
  $region14: #{multihead_autotune_variance_forward.1} parent=0 // pred_check
    _
  $region15: #{multihead_autotune_variance_forward.1} parent=0 // pred_check_branch
    %102 = sbr.rel (0) target = $region17
  $region16: #{multihead_autotune_variance_forward.1} parent=0 // pred_region
    _
  $region17: #{multihead_autotune_variance_forward.1} parent=0 // pred_fallthru
    _
  // Predicated region
  $region18: #{multihead_autotune_variance_forward.1} parent=0 // pred_check
    _
  $region19: #{multihead_autotune_variance_forward.1} parent=0 // pred_check_branch
    %104 = sbr.rel (0) target = $region21
  $region20: #{multihead_autotune_variance_forward.1} parent=0 // pred_region
    _
  $region21: #{multihead_autotune_variance_forward.1} parent=0 // pred_fallthru
    _
  // Predicated region
  $region22: #{multihead_autotune_variance_forward.1} parent=0 // pred_check
    _
  $region23: #{multihead_autotune_variance_forward.1} parent=0 // pred_check_branch
    %106 = sbr.rel (0) target = $region25
  $region24: #{multihead_autotune_variance_forward.1} parent=0 // pred_region
    _
  $region25: #{multihead_autotune_variance_forward.1} parent=0 // pred_fallthru
    _
  // Predicated region
  $region26: #{multihead_autotune_variance_forward.1} parent=0 // pred_check
    _
  $region27: #{multihead_autotune_variance_forward.1} parent=0 // pred_check_branch
    %108 = sbr.rel (0) target = $region29
  $region28: #{multihead_autotune_variance_forward.1} parent=0 // pred_region
    _
  $region29: #{multihead_autotune_variance_forward.1} parent=0 // pred_fallthru
    _

</llo_original>
